<compile_context>
chip_gen: v7x
topology: tpu7x:2x2x1
jax: 0.10.0
libtpu: 0.0.40
codegen_flags: <defaults>
</compile_context>

<pallas_src>
import jax
import jax.numpy as jnp
from jax.experimental import pallas as pl
from jax.experimental.pallas import tpu as pltpu

_OUT_LANES = 128  # lane-dense output width (Q1, Q2 live in cols 0 and 1)


def _round_up(x, m):
    return ((x + m - 1) // m) * m


def _double_q_kernel(x_ref, w1_ref, b1_ref, w2_ref, b2_ref, w3_ref, b3_ref,
                     out_ref):
    """Fused twin-critic MLP on one batch tile.

    Hidden activations of both nets are stacked along lanes (width 2H = 128),
    W2/W3 are block-diagonal so the two nets stay independent, and the final
    store is one lane-dense (tm, 128) tile whose first two lanes are (Q1, Q2).
    Weights arrive pre-cast to bf16; biases are f32.
    """
    bf16 = jnp.bfloat16
    f32 = jnp.float32

    x = x_ref[...].astype(bf16)                       # (tm, S+A)

    # Layer 1: one K=(S+A) matmul onto the stacked 2H hidden width.
    h1 = jnp.dot(x, w1_ref[...], preferred_element_type=f32)
    h1 = jnp.maximum(h1 + b1_ref[...], 0.0)

    # Layer 2 (block-diagonal stacked): (tm, 2H) @ (2H, 2H)
    h2 = jnp.dot(h1.astype(bf16), w2_ref[...], preferred_element_type=f32)
    h2 = jnp.maximum(h2 + b2_ref[...], 0.0)

    # Heads (stacked + lane-padded): (tm, 2H) @ (2H, 128) -> (tm, 128)
    q = jnp.dot(h2.astype(bf16), w3_ref[...], preferred_element_type=f32)
    out_ref[...] = (q + b3_ref[...]).astype(out_ref.dtype)


def pack_double_q_params(p1, p2):
    """Stack two Q-nets' parameters into one fused, MXU-ready parameter set.

    Each p = (w1 (S+A,H), b1 (H,), w2 (H,H), b2 (H,), w3 (H,1), b3 (1,)).
    Returns:
      W1 (S+A, 2H) bf16, b1 (1, 2H) f32,
      W2 (2H, 2H) bf16 block-diagonal, b2 (1, 2H) f32,
      W3 (2H, 128) bf16 block-diagonal zero-padded, b3 (1, 128) f32 zero-padded.
    """
    w1_1, b1_1, w2_1, b2_1, w3_1, b3_1 = p1
    w1_2, b1_2, w2_2, b2_2, w3_2, b3_2 = p2
    H = w2_1.shape[0]
    f32 = jnp.float32
    bf16 = jnp.bfloat16

    w1 = jnp.concatenate([w1_1, w1_2], axis=1).astype(bf16)          # (S+A, 2H)
    b1 = jnp.concatenate([b1_1, b1_2], axis=-1).reshape(1, 2 * H).astype(f32)

    zhh = jnp.zeros((H, H), f32)
    w2 = jnp.concatenate(
        [jnp.concatenate([w2_1, zhh], axis=1),
         jnp.concatenate([zhh, w2_2], axis=1)], axis=0).astype(bf16)  # (2H, 2H)
    b2 = jnp.concatenate([b2_1, b2_2], axis=-1).reshape(1, 2 * H).astype(f32)

    # Heads: block-diagonal (2H, 2), zero-padded along lanes to 128 so the
    # output store is lane-dense.
    zh1 = jnp.zeros((H, 1), f32)
    w3_narrow = jnp.concatenate(
        [jnp.concatenate([w3_1, zh1], axis=1),
         jnp.concatenate([zh1, w3_2], axis=1)], axis=0)               # (2H, 2)
    w3 = jnp.zeros((2 * H, _OUT_LANES), f32).at[:, :2].set(w3_narrow)
    w3 = w3.astype(bf16)
    b3_narrow = jnp.concatenate([b3_1, b3_2], axis=-1).reshape(1, 2)
    b3 = jnp.zeros((1, _OUT_LANES), f32).at[:, :2].set(b3_narrow)
    return (w1, b1, w2, b2, w3, b3)


def double_q_forward(s, a, fused_params, *, tm=1024):
    """Equivalent of doubleQ.forward(s, a) -> (Q1, Q2), each shape (B, 1)."""
    w1, b1, w2, b2, w3, b3 = fused_params
    B = s.shape[0]
    K = w1.shape[0]          # S + A
    H2 = w2.shape[0]         # 2H (stacked hidden width)

    # Single fused layer-1 operand (cheap XLA concat on the host side).
    x = jnp.concatenate([s, a], axis=-1)
    assert x.shape[1] == K

    # Batch tile: always a multiple of 8 sublanes; pad B so the grid divides.
    tm_eff = min(_round_up(tm, 8), _round_up(B, 8))
    Bp = _round_up(B, tm_eff)
    if Bp != B:
        x = jnp.pad(x, ((0, Bp - B), (0, 0)))

    grid = (Bp // tm_eff,)

    # Advisory cost estimate (helps XLA schedule this small kernel in a graph).
    flops = 2 * Bp * (K * H2 + H2 * H2 + H2 * _OUT_LANES)
    bytes_accessed = (Bp * K * 4 + Bp * _OUT_LANES * 4
                      + (K * H2 + H2 * H2 + H2 * _OUT_LANES) * 2
                      + (2 * H2 + _OUT_LANES) * 4)
    cost = pl.CostEstimate(flops=flops, transcendentals=0,
                           bytes_accessed=bytes_accessed)

    out = pl.pallas_call(
        _double_q_kernel,
        out_shape=jax.ShapeDtypeStruct((Bp, _OUT_LANES), jnp.float32),
        grid_spec=pl.GridSpec(
            grid=grid,
            in_specs=[
                # batch-tiled activations (software-pipelined)
                pl.BlockSpec((tm_eff, K), lambda i: (i, 0)),
                # parameters: constant index_map -> DMA'd once, VMEM-resident
                pl.BlockSpec((K, H2), lambda i: (0, 0)),
                pl.BlockSpec((1, H2), lambda i: (0, 0)),
                pl.BlockSpec((H2, H2), lambda i: (0, 0)),
                pl.BlockSpec((1, H2), lambda i: (0, 0)),
                pl.BlockSpec((H2, _OUT_LANES), lambda i: (0, 0)),
                pl.BlockSpec((1, _OUT_LANES), lambda i: (0, 0)),
            ],
            out_specs=pl.BlockSpec((tm_eff, _OUT_LANES), lambda i: (i, 0)),
        ),
        compiler_params=pltpu.CompilerParams(
            dimension_semantics=("parallel",),   # shards across TCs on v7x
        ),
        cost_estimate=cost,
    )(x, w1, b1, w2, b2, w3, b3)

    q = out[:B, :2]          # drop batch padding and the zero lane padding
    return q[:, 0:1], q[:, 1:2]


def init_q_params(key, in_dim, hidden, out_dim=1):
    """Deterministic small random init for one Q-net (W stored as (in, out))."""
    k1, k2, k3, k4, k5, k6 = jax.random.split(key, 6)
    scale = 0.1
    w1 = scale * jax.random.normal(k1, (in_dim, hidden), jnp.float32)
    b1 = scale * jax.random.normal(k4, (hidden,), jnp.float32)
    w2 = scale * jax.random.normal(k2, (hidden, hidden), jnp.float32)
    b2 = scale * jax.random.normal(k5, (hidden,), jnp.float32)
    w3 = scale * jax.random.normal(k3, (hidden, out_dim), jnp.float32)
    b3 = scale * jax.random.normal(k6, (out_dim,), jnp.float32)
    return (w1, b1, w2, b2, w3, b3)


def _ref_double_q(s, a, p1, p2):
    """Plain-JAX reference with the same bf16-operand / f32-accumulate math."""
    x = jnp.concatenate([s, a], axis=-1)

    def one(p):
        w1, b1, w2, b2, w3, b3 = p
        h1 = jnp.maximum(
            jnp.dot(x.astype(jnp.bfloat16), w1.astype(jnp.bfloat16),
                    preferred_element_type=jnp.float32) + b1, 0.0)
        h2 = jnp.maximum(
            jnp.dot(h1.astype(jnp.bfloat16), w2.astype(jnp.bfloat16),
                    preferred_element_type=jnp.float32) + b2, 0.0)
        return jnp.dot(h2.astype(jnp.bfloat16), w3.astype(jnp.bfloat16),
                       preferred_element_type=jnp.float32) + b3

    return one(p1), one(p2)


if __name__ == "__main__":
    # Small shapes consistent with an MLP Q-critic over (state, action).
    B = 64
    STATE_DIM = 16
    ACTION_DIM = 8
    HIDDEN = 64          # per net; stacked hidden = 128 = full lane width

    key = jax.random.PRNGKey(0)
    ks, ka, kn1, kn2 = jax.random.split(key, 4)

    s = jax.random.normal(ks, (B, STATE_DIM), jnp.float32)
    a = jax.random.normal(ka, (B, ACTION_DIM), jnp.float32)

    params1 = init_q_params(kn1, STATE_DIM + ACTION_DIM, HIDDEN)
    params2 = init_q_params(kn2, STATE_DIM + ACTION_DIM, HIDDEN)
    fused = pack_double_q_params(params1, params2)

    # tm=32 -> grid of 2 steps: exercises pipelining + weight residency.
    q1, q2 = double_q_forward(s, a, fused, tm=32)
    jax.block_until_ready((q1, q2))

    # Also run the default (single-step, large-tile) path once.
    q1b, q2b = double_q_forward(s, a, fused)
    jax.block_until_ready((q1b, q2b))

    r1, r2 = _ref_double_q(s, a, params1, params2)

    assert q1.shape == (B, 1) and q2.shape == (B, 1)
    assert jnp.allclose(q1, r1, atol=1e-4, rtol=1e-4)
    assert jnp.allclose(q2, r2, atol=1e-4, rtol=1e-4)
    assert jnp.allclose(q1b, r1, atol=1e-4, rtol=1e-4)
    assert jnp.allclose(q2b, r2, atol=1e-4, rtol=1e-4)

    print("KERNEL_OK")
</pallas_src>

<mosaic_0001>
module attributes {stable_mosaic.version = 11 : i64} {
  func.func @_double_q_kernel(%arg0: i32, %arg1: memref<32x24xf32, #tpu.memory_space<vmem>>, %arg2: memref<24x128xbf16, #tpu.memory_space<vmem>>, %arg3: memref<1x128xf32, #tpu.memory_space<vmem>>, %arg4: memref<128x128xbf16, #tpu.memory_space<vmem>>, %arg5: memref<1x128xf32, #tpu.memory_space<vmem>>, %arg6: memref<128x128xbf16, #tpu.memory_space<vmem>>, %arg7: memref<1x128xf32, #tpu.memory_space<vmem>>, %arg8: memref<32x128xf32, #tpu.memory_space<vmem>>) attributes {dimension_semantics = [#tpu.dimension_semantics<parallel>], iteration_bounds = array<i64: 2>, scalar_prefetch = 0 : i64, scratch_operands = 0 : i64, tpu.core_type = #tpu.core_type<tc>, window_params = [{transform_indices = @transform_0, window_bounds = array<i64: 32, 24>}, {pipeline_mode = #tpu.pipeline_mode<synchronous>, transform_indices = @transform_1, window_bounds = array<i64: 24, 128>}, {pipeline_mode = #tpu.pipeline_mode<synchronous>, transform_indices = @transform_2, window_bounds = array<i64: 1, 128>}, {pipeline_mode = #tpu.pipeline_mode<synchronous>, transform_indices = @transform_3, window_bounds = array<i64: 128, 128>}, {pipeline_mode = #tpu.pipeline_mode<synchronous>, transform_indices = @transform_4, window_bounds = array<i64: 1, 128>}, {pipeline_mode = #tpu.pipeline_mode<synchronous>, transform_indices = @transform_5, window_bounds = array<i64: 128, 128>}, {pipeline_mode = #tpu.pipeline_mode<synchronous>, transform_indices = @transform_6, window_bounds = array<i64: 1, 128>}, {transform_indices = @transform_7, window_bounds = array<i64: 32, 128>}]} {
    %c0 = arith.constant 0 : index
    %c0_0 = arith.constant 0 : index
    %0 = vector.load %arg1[%c0, %c0_0] : memref<32x24xf32, #tpu.memory_space<vmem>>, vector<32x24xf32>
    %1 = arith.truncf %0 : vector<32x24xf32> to vector<32x24xbf16>
    %c0_1 = arith.constant 0 : index
    %c0_2 = arith.constant 0 : index
    %2 = vector.load %arg2[%c0_1, %c0_2] : memref<24x128xbf16, #tpu.memory_space<vmem>>, vector<24x128xbf16>
    %cst = arith.constant dense<0.000000e+00> : vector<32x128xf32>
    %3 = tpu.matmul %1, %2, %cst {dimension_numbers = #tpu.dot_dimension_numbers<[1], [0], [0], [1], [0, 0, 1, 1], [], []>} : vector<32x24xbf16>, vector<24x128xbf16>, vector<32x128xf32> -> vector<32x128xf32>
    %c0_3 = arith.constant 0 : index
    %c0_4 = arith.constant 0 : index
    %4 = vector.load %arg3[%c0_3, %c0_4] : memref<1x128xf32, #tpu.memory_space<vmem>>, vector<1x128xf32>
    %5 = vector.broadcast %4 : vector<1x128xf32> to vector<32x128xf32>
    %6 = arith.addf %3, %5 : vector<32x128xf32>
    %cst_5 = arith.constant 0.000000e+00 : f32
    %7 = vector.broadcast %cst_5 : f32 to vector<32x128xf32>
    %8 = arith.maximumf %6, %7 : vector<32x128xf32>
    %9 = arith.truncf %8 : vector<32x128xf32> to vector<32x128xbf16>
    %c0_6 = arith.constant 0 : index
    %c0_7 = arith.constant 0 : index
    %10 = vector.load %arg4[%c0_6, %c0_7] : memref<128x128xbf16, #tpu.memory_space<vmem>>, vector<128x128xbf16>
    %cst_8 = arith.constant dense<0.000000e+00> : vector<32x128xf32>
    %11 = tpu.matmul %9, %10, %cst_8 {dimension_numbers = #tpu.dot_dimension_numbers<[1], [0], [0], [1], [0, 0, 1, 1], [], []>} : vector<32x128xbf16>, vector<128x128xbf16>, vector<32x128xf32> -> vector<32x128xf32>
    %c0_9 = arith.constant 0 : index
    %c0_10 = arith.constant 0 : index
    %12 = vector.load %arg5[%c0_9, %c0_10] : memref<1x128xf32, #tpu.memory_space<vmem>>, vector<1x128xf32>
    %13 = vector.broadcast %12 : vector<1x128xf32> to vector<32x128xf32>
    %14 = arith.addf %11, %13 : vector<32x128xf32>
    %cst_11 = arith.constant 0.000000e+00 : f32
    %15 = vector.broadcast %cst_11 : f32 to vector<32x128xf32>
    %16 = arith.maximumf %14, %15 : vector<32x128xf32>
    %17 = arith.truncf %16 : vector<32x128xf32> to vector<32x128xbf16>
    %c0_12 = arith.constant 0 : index
    %c0_13 = arith.constant 0 : index
    %18 = vector.load %arg6[%c0_12, %c0_13] : memref<128x128xbf16, #tpu.memory_space<vmem>>, vector<128x128xbf16>
    %cst_14 = arith.constant dense<0.000000e+00> : vector<32x128xf32>
    %19 = tpu.matmul %17, %18, %cst_14 {dimension_numbers = #tpu.dot_dimension_numbers<[1], [0], [0], [1], [0, 0, 1, 1], [], []>} : vector<32x128xbf16>, vector<128x128xbf16>, vector<32x128xf32> -> vector<32x128xf32>
    %c0_15 = arith.constant 0 : index
    %c0_16 = arith.constant 0 : index
    %20 = vector.load %arg7[%c0_15, %c0_16] : memref<1x128xf32, #tpu.memory_space<vmem>>, vector<1x128xf32>
    %21 = vector.broadcast %20 : vector<1x128xf32> to vector<32x128xf32>
    %22 = arith.addf %19, %21 : vector<32x128xf32>
    %c0_17 = arith.constant 0 : index
    %c0_18 = arith.constant 0 : index
    %23 = vector.load %arg8[%c0_17, %c0_18] : memref<32x128xf32, #tpu.memory_space<vmem>>, vector<32x128xf32>
    tpu.vector_store %arg8[%c0_17, %c0_18], %22 {strides = array<i32>} : memref<32x128xf32, #tpu.memory_space<vmem>>, vector<32x128xf32>,
    return
  }
  func.func @transform_0(%arg0: i32) -> (i32, i32) {
    %c0_i32 = arith.constant 0 : i32
    %c0_i32_0 = arith.constant 0 : i32
    return %arg0, %c0_i32 : i32, i32
  }
  func.func @transform_1(%arg0: i32) -> (i32, i32) {
    %c0_i32 = arith.constant 0 : i32
    %c0_i32_0 = arith.constant 0 : i32
    %c0_i32_1 = arith.constant 0 : i32
    return %c0_i32, %c0_i32_0 : i32, i32
  }
  func.func @transform_2(%arg0: i32) -> (i32, i32) {
    %c0_i32 = arith.constant 0 : i32
    %c0_i32_0 = arith.constant 0 : i32
    %c0_i32_1 = arith.constant 0 : i32
    return %c0_i32, %c0_i32_0 : i32, i32
  }
  func.func @transform_3(%arg0: i32) -> (i32, i32) {
    %c0_i32 = arith.constant 0 : i32
    %c0_i32_0 = arith.constant 0 : i32
    %c0_i32_1 = arith.constant 0 : i32
    return %c0_i32, %c0_i32_0 : i32, i32
  }
  func.func @transform_4(%arg0: i32) -> (i32, i32) {
    %c0_i32 = arith.constant 0 : i32
    %c0_i32_0 = arith.constant 0 : i32
    %c0_i32_1 = arith.constant 0 : i32
    return %c0_i32, %c0_i32_0 : i32, i32
  }
  func.func @transform_5(%arg0: i32) -> (i32, i32) {
    %c0_i32 = arith.constant 0 : i32
    %c0_i32_0 = arith.constant 0 : i32
    %c0_i32_1 = arith.constant 0 : i32
    return %c0_i32, %c0_i32_0 : i32, i32
  }
  func.func @transform_6(%arg0: i32) -> (i32, i32) {
    %c0_i32 = arith.constant 0 : i32
    %c0_i32_0 = arith.constant 0 : i32
    %c0_i32_1 = arith.constant 0 : i32
    return %c0_i32, %c0_i32_0 : i32, i32
  }
  func.func @transform_7(%arg0: i32) -> (i32, i32) {
    %c0_i32 = arith.constant 0 : i32
    %c0_i32_0 = arith.constant 0 : i32
    return %arg0, %c0_i32 : i32, i32
  }
}

</mosaic_0001>

<llo_original>
// kernel: tpu_custom_call.1
$region0: #{tpu_custom_call.1}
  #allocation0 [shape = 'u32[]', space=smem, size = 0x4, offset = 0x4, fixed_abs, tag = 'smem constant byte address 0x4 - core index']
  #allocation1 [shape = 'u32[144,128]{1,0:T(1,128)}', space=vmem, size = 0x12000, scoped, tag = 'internal scratch']
  %s0 = inlined_call_operand.vmem [shape: f32[64,24], index: 0, kind: input, shape index: {}]
  %s1 = inlined_call_operand.vmem [shape: bf16[24,128], index: 1, kind: input, shape index: {}]
  %s2 = inlined_call_operand.vmem [shape: f32[1,128], index: 2, kind: input, shape index: {}]
  %s3 = inlined_call_operand.vmem [shape: bf16[128,128], index: 3, kind: input, shape index: {}]
  %s4 = inlined_call_operand.vmem [shape: f32[1,128], index: 4, kind: input, shape index: {}]
  %s5 = inlined_call_operand.hbm [shape: bf16[128,128], index: 5, kind: input, shape index: {}]
  %s6 = inlined_call_operand.vmem [shape: f32[1,128], index: 6, kind: input, shape index: {}]
  %s7 = inlined_call_operand.hbm [shape: f32[64,128], index: 7, kind: output, shape index: {}]
  %s8 = sld [smem:[#allocation0]]
  $region65: #{tpu_custom_call.1} parent=0
    _
  %s10 = ssub.s32 1, %s8
  %s11 = scalar_select 0, %s10, %s8
  $region1: #{tpu_custom_call.1} parent=0
    #allocation2 [shape = 'u8[32768]{0}', space=vmem, size = 0x8000, scoped, tag = 'input window, operand 5, single buffered']
    #allocation3 [shape = 's32[2]{0}', space=sflag, size = 0x8, scoped, tag = 'scoped memory for tpu_custom_call.1']
    #allocation4 [shape = 's32[2]{0}', space=sflag, size = 0x8, scoped, tag = 'scoped memory for tpu_custom_call.1']
    #allocation5 [shape = 'u8[32768]{0}', space=vmem, size = 0x8000, scoped, tag = 'output window, operand 0']
    %12 = vsyncpa [#allocation3], 0
    %13 = vsyncpa [#allocation4], 0
    %s14 = scalar_lea.sflag [#allocation4], 1
    %15 = vsyncpa %s14, 0
    loop: start=0, step=1, limit=4
    $region2: #{tpu_custom_call.1} parent=1 // loop_pre_header
      _
    $region3: #{tpu_custom_call.1} parent=1 // loop_header
      %s17 = sphi 0, %s21
      %p18 = scmp.ge.s32.totalorder %s17, 4
      %s27 = sphi 0, %s29
      %s30 = sphi 0, %s27
      %s31 = sphi 0, %s30
      %s47 = sphi 0, %s31
      %s51 = sphi 0, %s51
      %s53 = sphi 0, %s51
      %s54 = sphi 0, %s53
      %s68 = sphi 0, %s54
      %s72 = sphi 0, %s72
      %s74 = sphi 0, %s72
      %s75 = sphi 0, %s74
      %s89 = sphi 0, %s75
      %s93 = sphi 0, %s93
      %s95 = sphi 0, %s93
      %s96 = sphi 0, %s95
      %s110 = sphi 0, %s96
      %s114 = sphi 0, %s114
      %s116 = sphi 0, %s114
      %s117 = sphi 0, %s116
      %s131 = sphi 0, %s117
      %s135 = sphi 0, %s135
      %s137 = sphi 0, %s135
      %s138 = sphi 0, %s137
      %s152 = sphi 0, %s138
      %s156 = sphi 0, %s156
      %s158 = sphi 0, %s156
      %s159 = sphi 0, %s158
      %s173 = sphi 0, %s159
      %s179 = sphi 0, %s181
      %s182 = sphi 0, %s179
      %s183 = sphi 0, %s182
      %s199 = sphi 0, %s183
    $region4: #{tpu_custom_call.1} parent=1 // loop_header_branch
      %20 = sbr.rel (%p18) target = $region8
    $region5: #{tpu_custom_call.1} parent=1 // loop_body
      %s22 = ssub.s32 %s17, 1
      %s23 = ssub.s32 %s17, 2
      %s24 = sadd.s32 %s17, 1
      %s25 = ssub.s32 %s17, %s24
      %p26 = scmp.eq.s32.totalorder %s25, 0
      %s28 = sadd.s32 %s27, 1
      %s29 = scalar_select %p26, %s27, %s28
      %p32 = pneg %p26
      %p33 = scmp.eq.s32.totalorder %s17, 1
      %p34 = por %p32, %p33
      %p35 = scmp.ne.s32.totalorder %s27, %s30
      %p36 = scmp.eq.s32.totalorder %s17, 0
      %p37 = por %p35, %p36
      %p38 = scmp.ne.s32.totalorder %s27, %s30
      %p39 = scmp.eq.s32.totalorder %s22, 1
      %p40 = por %p38, %p39
      %p41 = scmp.ne.s32.totalorder %s30, %s31
      %p42 = scmp.eq.s32.totalorder %s22, 0
      %p43 = por %p41, %p42
      %p44 = scmp.ne.s32.totalorder %s30, %s31
      %p45 = scmp.eq.s32.totalorder %s23, 1
      %p46 = por %p44, %p45
      %p48 = scmp.ne.s32.totalorder %s31, %s47
      %p49 = scmp.eq.s32.totalorder %s23, 0
      %p50 = por %p48, %p49
      %s52 = sadd.s32 %s51, 1
      %p55 = scmp.eq.s32.totalorder %s17, 1
      %p56 = scmp.ne.s32.totalorder %s51, %s53
      %p57 = scmp.eq.s32.totalorder %s17, 0
      %p58 = por %p56, %p57
      %p59 = scmp.ne.s32.totalorder %s51, %s53
      %p60 = scmp.eq.s32.totalorder %s22, 1
      %p61 = por %p59, %p60
      %p62 = scmp.ne.s32.totalorder %s53, %s54
      %p63 = scmp.eq.s32.totalorder %s22, 0
      %p64 = por %p62, %p63
      %p65 = scmp.ne.s32.totalorder %s53, %s54
      %p66 = scmp.eq.s32.totalorder %s23, 1
      %p67 = por %p65, %p66
      %p69 = scmp.ne.s32.totalorder %s54, %s68
      %p70 = scmp.eq.s32.totalorder %s23, 0
      %p71 = por %p69, %p70
      %s73 = sadd.s32 %s72, 1
      %p76 = scmp.eq.s32.totalorder %s17, 1
      %p77 = scmp.ne.s32.totalorder %s72, %s74
      %p78 = scmp.eq.s32.totalorder %s17, 0
      %p79 = por %p77, %p78
      %p80 = scmp.ne.s32.totalorder %s72, %s74
      %p81 = scmp.eq.s32.totalorder %s22, 1
      %p82 = por %p80, %p81
      %p83 = scmp.ne.s32.totalorder %s74, %s75
      %p84 = scmp.eq.s32.totalorder %s22, 0
      %p85 = por %p83, %p84
      %p86 = scmp.ne.s32.totalorder %s74, %s75
      %p87 = scmp.eq.s32.totalorder %s23, 1
      %p88 = por %p86, %p87
      %p90 = scmp.ne.s32.totalorder %s75, %s89
      %p91 = scmp.eq.s32.totalorder %s23, 0
      %p92 = por %p90, %p91
      %s94 = sadd.s32 %s93, 1
      %p97 = scmp.eq.s32.totalorder %s17, 1
      %p98 = scmp.ne.s32.totalorder %s93, %s95
      %p99 = scmp.eq.s32.totalorder %s17, 0
      %p100 = por %p98, %p99
      %p101 = scmp.ne.s32.totalorder %s93, %s95
      %p102 = scmp.eq.s32.totalorder %s22, 1
      %p103 = por %p101, %p102
      %p104 = scmp.ne.s32.totalorder %s95, %s96
      %p105 = scmp.eq.s32.totalorder %s22, 0
      %p106 = por %p104, %p105
      %p107 = scmp.ne.s32.totalorder %s95, %s96
      %p108 = scmp.eq.s32.totalorder %s23, 1
      %p109 = por %p107, %p108
      %p111 = scmp.ne.s32.totalorder %s96, %s110
      %p112 = scmp.eq.s32.totalorder %s23, 0
      %p113 = por %p111, %p112
      %s115 = sadd.s32 %s114, 1
      %p118 = scmp.eq.s32.totalorder %s17, 1
      %p119 = scmp.ne.s32.totalorder %s114, %s116
      %p120 = scmp.eq.s32.totalorder %s17, 0
      %p121 = por %p119, %p120
      %p122 = scmp.ne.s32.totalorder %s114, %s116
      %p123 = scmp.eq.s32.totalorder %s22, 1
      %p124 = por %p122, %p123
      %p125 = scmp.ne.s32.totalorder %s116, %s117
      %p126 = scmp.eq.s32.totalorder %s22, 0
      %p127 = por %p125, %p126
      %p128 = scmp.ne.s32.totalorder %s116, %s117
      %p129 = scmp.eq.s32.totalorder %s23, 1
      %p130 = por %p128, %p129
      %p132 = scmp.ne.s32.totalorder %s117, %s131
      %p133 = scmp.eq.s32.totalorder %s23, 0
      %p134 = por %p132, %p133
      %s136 = sadd.s32 %s135, 1
      %p139 = scmp.eq.s32.totalorder %s17, 1
      %p140 = scmp.ne.s32.totalorder %s135, %s137
      %p141 = scmp.eq.s32.totalorder %s17, 0
      %p142 = por %p140, %p141
      %p143 = scmp.ne.s32.totalorder %s135, %s137
      %p144 = scmp.eq.s32.totalorder %s22, 1
      %p145 = por %p143, %p144
      %p146 = scmp.ne.s32.totalorder %s137, %s138
      %p147 = scmp.eq.s32.totalorder %s22, 0
      %p148 = por %p146, %p147
      %p149 = scmp.ne.s32.totalorder %s137, %s138
      %p150 = scmp.eq.s32.totalorder %s23, 1
      %p151 = por %p149, %p150
      %p153 = scmp.ne.s32.totalorder %s138, %s152
      %p154 = scmp.eq.s32.totalorder %s23, 0
      %p155 = por %p153, %p154
      %s157 = sadd.s32 %s156, 1
      %p160 = scmp.eq.s32.totalorder %s17, 1
      %p161 = scmp.ne.s32.totalorder %s156, %s158
      %p162 = scmp.eq.s32.totalorder %s17, 0
      %p163 = por %p161, %p162
      %p164 = scmp.ne.s32.totalorder %s156, %s158
      %p165 = scmp.eq.s32.totalorder %s22, 1
      %p166 = por %p164, %p165
      %p167 = scmp.ne.s32.totalorder %s158, %s159
      %p168 = scmp.eq.s32.totalorder %s22, 0
      %p169 = por %p167, %p168
      %p170 = scmp.ne.s32.totalorder %s158, %s159
      %p171 = scmp.eq.s32.totalorder %s23, 1
      %p172 = por %p170, %p171
      %p174 = scmp.ne.s32.totalorder %s159, %s173
      %p175 = scmp.eq.s32.totalorder %s23, 0
      %p176 = por %p174, %p175
      %s177 = ssub.s32 %s17, %s24
      %p178 = scmp.eq.s32.totalorder %s177, 0
      %s180 = sadd.s32 %s179, 1
      %s181 = scalar_select %p178, %s179, %s180
      %p184 = pneg %p178
      %p185 = scmp.eq.s32.totalorder %s17, 1
      %p186 = por %p184, %p185
      %p187 = scmp.ne.s32.totalorder %s179, %s182
      %p188 = scmp.eq.s32.totalorder %s17, 0
      %p189 = por %p187, %p188
      %p190 = scmp.ne.s32.totalorder %s179, %s182
      %p191 = scmp.eq.s32.totalorder %s22, 1
      %p192 = por %p190, %p191
      %p193 = scmp.ne.s32.totalorder %s182, %s183
      %p194 = scmp.eq.s32.totalorder %s22, 0
      %p195 = por %p193, %p194
      %p196 = scmp.ne.s32.totalorder %s182, %s183
      %p197 = scmp.eq.s32.totalorder %s23, 1
      %p198 = por %p196, %p197
      %p200 = scmp.ne.s32.totalorder %s183, %s199
      %p201 = scmp.eq.s32.totalorder %s23, 0
      %p202 = por %p200, %p201
      %p203 = scmp.le.s32.totalorder 1, %s17
      %p204 = scmp.lt.s32.totalorder %s17, 3
      %p205 = pnand %p203, %p204
      %p206 = pneg %p205
      // Predicated region
      $region9: #{tpu_custom_call.1} parent=5 // pred_check
        _
      $region10: #{tpu_custom_call.1} parent=5 // pred_check_branch
        %208 = sbr.rel (%p205) target = $region12
      $region11: #{tpu_custom_call.1} parent=5 // pred_region
        %s209 = ssub.s32 %s17, 1
        // Predicated region
        $region13: #{tpu_custom_call.1} parent=11 // pred_check
          %p210 = pneg %p64
        $region14: #{tpu_custom_call.1} parent=11 // pred_check_branch
          %212 = sbr.rel (%p210) target = $region16
        $region15: #{tpu_custom_call.1} parent=11 // pred_region
          _
        $region16: #{tpu_custom_call.1} parent=11 // pred_fallthru
          _
        // Predicated region
        $region17: #{tpu_custom_call.1} parent=11 // pred_check
          %p213 = pneg %p85
        $region18: #{tpu_custom_call.1} parent=11 // pred_check_branch
          %215 = sbr.rel (%p213) target = $region20
        $region19: #{tpu_custom_call.1} parent=11 // pred_region
          _
        $region20: #{tpu_custom_call.1} parent=11 // pred_fallthru
          _
        // Predicated region
        $region21: #{tpu_custom_call.1} parent=11 // pred_check
          %p216 = pneg %p106
        $region22: #{tpu_custom_call.1} parent=11 // pred_check_branch
          %218 = sbr.rel (%p216) target = $region24
        $region23: #{tpu_custom_call.1} parent=11 // pred_region
          _
        $region24: #{tpu_custom_call.1} parent=11 // pred_fallthru
          _
        // Predicated region
        $region25: #{tpu_custom_call.1} parent=11 // pred_check
          %p219 = pneg %p127
        $region26: #{tpu_custom_call.1} parent=11 // pred_check_branch
          %221 = sbr.rel (%p219) target = $region28
        $region27: #{tpu_custom_call.1} parent=11 // pred_region
          _
        $region28: #{tpu_custom_call.1} parent=11 // pred_fallthru
          _
        // Predicated region
        $region29: #{tpu_custom_call.1} parent=11 // pred_check
          %p222 = pneg %p148
        $region30: #{tpu_custom_call.1} parent=11 // pred_check_branch
          %224 = sbr.rel (%p222) target = $region32
        $region31: #{tpu_custom_call.1} parent=11 // pred_region
          %s226 = ssub.s32 1024, 1024
          %227 = vsyncadd [#allocation3], %s226
          %s228 = sshll.u32 [#allocation2], 4
          %s229 = int_to_ptr.vmem [resolvable:$true] %s228
          %234 = dma.hbm_to_vmem [thread:$0]  %s5, 1024, %s229, [#allocation3], 64, 64, 4
        $region32: #{tpu_custom_call.1} parent=11 // pred_fallthru
          _
        // Predicated region
        $region33: #{tpu_custom_call.1} parent=11 // pred_check
          %p235 = pneg %p169
        $region34: #{tpu_custom_call.1} parent=11 // pred_check_branch
          %237 = sbr.rel (%p235) target = $region36
        $region35: #{tpu_custom_call.1} parent=11 // pred_region
          _
        $region36: #{tpu_custom_call.1} parent=11 // pred_fallthru
          _
      $region12: #{tpu_custom_call.1} parent=5 // pred_fallthru
        _
      %p238 = scmp.lt.s32.totalorder %s17, 2
      // Predicated region
      $region37: #{tpu_custom_call.1} parent=5 // pred_check
        %p239 = pneg %p238
      $region38: #{tpu_custom_call.1} parent=5 // pred_check_branch
        %241 = sbr.rel (%p239) target = $region40
      $region39: #{tpu_custom_call.1} parent=5 // pred_region
        // Predicated region
        $region41: #{tpu_custom_call.1} parent=39 // pred_check
          %p242 = pneg %p37
        $region42: #{tpu_custom_call.1} parent=39 // pred_check_branch
          %244 = sbr.rel (%p242) target = $region44
        $region43: #{tpu_custom_call.1} parent=39 // pred_region
          %s245 = smul.u32 4, %s17
          %p246 = scmp.lt.s32.totalorder %s245, 7
          %s247 = scalar_select %p246, %s245, 7
          %s248 = smul.addr %s247, 8
          %s249 = scalar_lea.vmem %s0, %s248
          %s250 = smul.u32 4, %s17
        $region44: #{tpu_custom_call.1} parent=39 // pred_fallthru
          _
      $region40: #{tpu_custom_call.1} parent=5 // pred_fallthru
        _
      %p251 = scmp.le.s32.totalorder 1, %s17
      %p252 = scmp.lt.s32.totalorder %s17, 3
      %p253 = pnand %p251, %p252
      %p254 = pneg %p253
      // Predicated region
      $region45: #{tpu_custom_call.1} parent=5 // pred_check
        _
      $region46: #{tpu_custom_call.1} parent=5 // pred_check_branch
        %256 = sbr.rel (%p253) target = $region48
      $region47: #{tpu_custom_call.1} parent=5 // pred_region
        %s257 = ssub.s32 %s17, 1
        // Predicated region
        $region49: #{tpu_custom_call.1} parent=47 // pred_check
          %p258 = pneg %p148
        $region50: #{tpu_custom_call.1} parent=47 // pred_check_branch
          %260 = sbr.rel (%p258) target = $region52
        $region51: #{tpu_custom_call.1} parent=47 // pred_region
          %261 = dma.done [#allocation3], 1024
        $region52: #{tpu_custom_call.1} parent=47 // pred_fallthru
          _
        %s262 = smul.u32 4, %s22
        %p263 = scmp.lt.s32.totalorder %s262, 7
        %s264 = scalar_select %p263, %s262, 7
        %s265 = smul.addr %s264, 8
        %s266 = scalar_lea.vmem %s0, %s265
        %p267 = pneg %p43
        %p268 = pneg %p40
        %p269 = pneg %p64
        %p270 = pneg %p61
        %p271 = pneg %p85
        %p272 = pneg %p82
        %p273 = pneg %p106
        %p274 = pneg %p103
        %p275 = pneg %p127
        %p276 = pneg %p124
        %p277 = pneg %p148
        %p278 = pneg %p145
        %p279 = pneg %p169
        %p280 = pneg %p166
        %p281 = pneg %p195
        %p282 = pneg %p192
        %s283 = sand.u32 %s182, 1
        %s284 = scalar_lea.sflag [#allocation4], %s283
        %s285 = sand.u32 %s182, 1
        %s286 = smul.addr %s285, 32
        %s287 = scalar_lea.vmem [#allocation5], %s286
        %s288 = smul.u32 4, %s22
        %p289 = scmp.lt.s32.totalorder %s288, 7
        %s290 = scalar_select %p289, %s288, 7
        %s291 = smul.addr %s290, 8
        %s292 = scalar_lea.vmem %s0, %s291
        %s293 = smul.u32 4, %s22
        %s294 = smul.u32 4, %s22
        %v296 = vld [vmem:[%s292] sm:$0xff]
        %v297 = vld [vmem:[%s292 + $0x8] sm:$0xff]
        %v298 = vld [vmem:[%s292 + $0x10] sm:$0xff]
        %v299 = vld [vmem:[%s292 + $0x18] sm:$0xff]
        %v300 = vpack.c.bf16 %v297, %v296
        %v301 = vpack.c.bf16 %v299, %v298
        %v302 = vld [vmem:[%s1] sm:$0xf]
        %v303 = vld [vmem:[%s1 + $0x4] sm:$0xf]
        %v304 = vld [vmem:[%s1 + $0x8] sm:$0xf]
        %v305 = vld [vmem:[%s2] sm:$0x1]
        %v307 = vlaneseq
        %v308 = vshrl.u32 %v307, 7
        %v309 = vsub.s32 0, %v308
        %v310 = vrot.slane %v305, %v309
        %v315 = vunpack.c.l.b16 %v302
        %v316 = vunpack.c.l.b16 %v303
        %v317 = vunpack.c.l.b16 %v304
        %v318 = vpack.c.b16 %v316, %v315
        %v319 = vpack.c.b16 %v317, %v317
        %vm321 = vcmask 195584
        %v323 = vsel %vm321, %v300, 0
        %v326 = vsel %vm321, %v301, 0
        %vm328 = vcmask 1043456
        %v330 = vsel %vm328, %v319, 0
        %332 = vmatprep.subr.bf16.mxu0 0
        %333 = vmatpush1.bf16.msra.mxu0 %v318
        %334 = vmatprep.subr.bf16.mxu0 0
        %335 = vmatpush1.bf16.msra.mxu0 %v330
        %336 = vmatprep.subr.bf16.mxu0 0
        %337 = vmatpush1.bf16.msra.mxu0 0
        %338 = vmatprep.subr.bf16.mxu0 0
        %339 = vmatpush1.bf16.msra.mxu0 0
        %340 = vmatprep.subr.bf16.mxu0 0
        %341 = vmatpush1.bf16.msra.mxu0 0
        %342 = vmatprep.subr.bf16.mxu0 0
        %343 = vmatpush1.bf16.msra.mxu0 0
        %344 = vmatprep.subr.bf16.mxu0 0
        %345 = vmatpush1.bf16.msra.mxu0 0
        %346 = vmatprep.subr.bf16.mxu0 0
        %347 = vmatpush1.bf16.msra.mxu0 0
        %348 = vmatprep.subr.bf16.mxu0 0
        %349 = vmatpush1.bf16.msra.mxu0 0
        %350 = vmatprep.subr.bf16.mxu0 0
        %351 = vmatpush1.bf16.msra.mxu0 0
        %352 = vmatprep.subr.bf16.mxu0 0
        %353 = vmatpush1.bf16.msra.mxu0 0
        %354 = vmatprep.subr.bf16.mxu0 0
        %355 = vmatpush1.bf16.msra.mxu0 0
        %356 = vmatprep.subr.bf16.mxu0 0
        %357 = vmatpush1.bf16.msra.mxu0 0
        %358 = vmatprep.subr.bf16.mxu0 0
        %359 = vmatpush1.bf16.msra.mxu0 0
        %360 = vmatprep.subr.bf16.mxu0 0
        %361 = vmatpush1.bf16.msra.mxu0 0
        %362 = vmatprep.subr.bf16.mxu0 0
        %363 = vmatpush1.bf16.msra.mxu0 0
        %364 = vmatprep.mubr.bf16.mxu0 0
        %365 = vmatmul.mubr.bf16.gmra.mrb[0].mxu0 %v323
        %v366 = vpop.f32.mrb[0].mxu0
        %v367 = vadd.f32 %v310, %v366
        %v368 = vpop.f32.mrb[0].mxu0
        %v369 = vpop.f32.mrb[0].mxu0
        %v370 = vadd.f32 %v310, %v369
        %v371 = vpop.f32.mrb[0].mxu0
        %372 = vmatprep.mubr.bf16.mxu0 0
        %373 = vmatmul.mubr.bf16.gmra.mrb[0].mxu0 %v326
        %v374 = vpop.f32.mrb[0].mxu0
        %v375 = vadd.f32 %v310, %v374
        %v376 = vpop.f32.mrb[0].mxu0
        %v377 = vpop.f32.mrb[0].mxu0
        %v378 = vadd.f32 %v310, %v377
        %v379 = vpop.f32.mrb[0].mxu0
        %380 = vdwg.mxu0
        %v381 = vmax.f32 %v367, 0.0
        %v382 = vmax.f32 %v370, 0.0
        %v383 = vmax.f32 %v375, 0.0
        %v384 = vmax.f32 %v378, 0.0
        %v385 = vpack.c.bf16 %v382, %v381
        %v386 = vpack.c.bf16 %v384, %v383
        %v387 = vld [vmem:[%s3] sm:$0xf]
        %v388 = vld [vmem:[%s3 + $0x4] sm:$0xf]
        %v389 = vld [vmem:[%s3 + $0x8] sm:$0xf]
        %v390 = vld [vmem:[%s3 + $0xc] sm:$0xf]
        %v391 = vld [vmem:[%s3 + $0x10] sm:$0xf]
        %v392 = vld [vmem:[%s3 + $0x14] sm:$0xf]
        %v393 = vld [vmem:[%s3 + $0x18] sm:$0xf]
        %v394 = vld [vmem:[%s3 + $0x1c] sm:$0xf]
        %v395 = vld [vmem:[%s3 + $0x20] sm:$0xf]
        %v396 = vld [vmem:[%s3 + $0x24] sm:$0xf]
        %v397 = vld [vmem:[%s3 + $0x28] sm:$0xf]
        %v398 = vld [vmem:[%s3 + $0x2c] sm:$0xf]
        %v399 = vld [vmem:[%s3 + $0x30] sm:$0xf]
        %v400 = vld [vmem:[%s3 + $0x34] sm:$0xf]
        %v401 = vld [vmem:[%s3 + $0x38] sm:$0xf]
        %v402 = vld [vmem:[%s3 + $0x3c] sm:$0xf]
        %v403 = vld [vmem:[%s4] sm:$0x1]
        %v405 = vlaneseq
        %v406 = vshrl.u32 %v405, 7
        %v407 = vsub.s32 0, %v406
        %v408 = vrot.slane %v403, %v407
        %v426 = vunpack.c.l.b16 %v387
        %v427 = vunpack.c.l.b16 %v388
        %v428 = vunpack.c.l.b16 %v389
        %v429 = vunpack.c.l.b16 %v390
        %v430 = vunpack.c.l.b16 %v391
        %v431 = vunpack.c.l.b16 %v392
        %v432 = vunpack.c.l.b16 %v393
        %v433 = vunpack.c.l.b16 %v394
        %v434 = vunpack.c.l.b16 %v395
        %v435 = vunpack.c.l.b16 %v396
        %v436 = vunpack.c.l.b16 %v397
        %v437 = vunpack.c.l.b16 %v398
        %v438 = vunpack.c.l.b16 %v399
        %v439 = vunpack.c.l.b16 %v400
        %v440 = vunpack.c.l.b16 %v401
        %v441 = vunpack.c.l.b16 %v402
        %v442 = vpack.c.b16 %v427, %v426
        %v443 = vpack.c.b16 %v429, %v428
        %v444 = vpack.c.b16 %v431, %v430
        %v445 = vpack.c.b16 %v433, %v432
        %v446 = vpack.c.b16 %v435, %v434
        %v447 = vpack.c.b16 %v437, %v436
        %v448 = vpack.c.b16 %v439, %v438
        %v449 = vpack.c.b16 %v441, %v440
        %458 = vmatprep.subr.bf16.mxu0 0
        %459 = vmatpush1.bf16.msra.mxu0 %v442
        %460 = vmatprep.subr.bf16.mxu0 0
        %461 = vmatpush1.bf16.msra.mxu0 %v443
        %462 = vmatprep.subr.bf16.mxu0 0
        %463 = vmatpush1.bf16.msra.mxu0 %v444
        %464 = vmatprep.subr.bf16.mxu0 0
        %465 = vmatpush1.bf16.msra.mxu0 %v445
        %466 = vmatprep.subr.bf16.mxu0 0
        %467 = vmatpush1.bf16.msra.mxu0 %v446
        %468 = vmatprep.subr.bf16.mxu0 0
        %469 = vmatpush1.bf16.msra.mxu0 %v447
        %470 = vmatprep.subr.bf16.mxu0 0
        %471 = vmatpush1.bf16.msra.mxu0 %v448
        %472 = vmatprep.subr.bf16.mxu0 0
        %473 = vmatpush1.bf16.msra.mxu0 %v449
        %474 = vmatprep.subr.bf16.mxu0 0
        %475 = vmatpush1.bf16.msra.mxu0 0
        %476 = vmatprep.subr.bf16.mxu0 0
        %477 = vmatpush1.bf16.msra.mxu0 0
        %478 = vmatprep.subr.bf16.mxu0 0
        %479 = vmatpush1.bf16.msra.mxu0 0
        %480 = vmatprep.subr.bf16.mxu0 0
        %481 = vmatpush1.bf16.msra.mxu0 0
        %482 = vmatprep.subr.bf16.mxu0 0
        %483 = vmatpush1.bf16.msra.mxu0 0
        %484 = vmatprep.subr.bf16.mxu0 0
        %485 = vmatpush1.bf16.msra.mxu0 0
        %486 = vmatprep.subr.bf16.mxu0 0
        %487 = vmatpush1.bf16.msra.mxu0 0
        %488 = vmatprep.subr.bf16.mxu0 0
        %489 = vmatpush1.bf16.msra.mxu0 0
        %490 = vmatprep.mubr.bf16.mxu0 0
        %491 = vmatmul.mubr.bf16.gmra.mrb[0].mxu0 %v385
        %v492 = vpop.f32.mrb[0].mxu0
        %v493 = vadd.f32 %v408, %v492
        %v494 = vpop.f32.mrb[0].mxu0
        %v495 = vpop.f32.mrb[0].mxu0
        %v496 = vadd.f32 %v408, %v495
        %v497 = vpop.f32.mrb[0].mxu0
        %498 = vmatprep.mubr.bf16.mxu0 0
        %499 = vmatmul.mubr.bf16.gmra.mrb[0].mxu0 %v386
        %v500 = vpop.f32.mrb[0].mxu0
        %v501 = vadd.f32 %v408, %v500
        %v502 = vpop.f32.mrb[0].mxu0
        %v503 = vpop.f32.mrb[0].mxu0
        %v504 = vadd.f32 %v408, %v503
        %v505 = vpop.f32.mrb[0].mxu0
        %506 = vdwg.mxu0
        %v507 = vmax.f32 %v493, 0.0
        %v508 = vmax.f32 %v496, 0.0
        %v509 = vmax.f32 %v501, 0.0
        %v510 = vmax.f32 %v504, 0.0
        %v511 = vpack.c.bf16 %v508, %v507
        %v512 = vpack.c.bf16 %v510, %v509
        %v513 = vld [vmem:[#allocation2] sm:$0xf]
        %v514 = vld [vmem:[#allocation2 + $0x4] sm:$0xf]
        %v515 = vld [vmem:[#allocation2 + $0x8] sm:$0xf]
        %v516 = vld [vmem:[#allocation2 + $0xc] sm:$0xf]
        %v517 = vld [vmem:[#allocation2 + $0x10] sm:$0xf]
        %v518 = vld [vmem:[#allocation2 + $0x14] sm:$0xf]
        %v519 = vld [vmem:[#allocation2 + $0x18] sm:$0xf]
        %v520 = vld [vmem:[#allocation2 + $0x1c] sm:$0xf]
        %v521 = vld [vmem:[#allocation2 + $0x20] sm:$0xf]
        %v522 = vld [vmem:[#allocation2 + $0x24] sm:$0xf]
        %v523 = vld [vmem:[#allocation2 + $0x28] sm:$0xf]
        %v524 = vld [vmem:[#allocation2 + $0x2c] sm:$0xf]
        %v525 = vld [vmem:[#allocation2 + $0x30] sm:$0xf]
        %v526 = vld [vmem:[#allocation2 + $0x34] sm:$0xf]
        %v527 = vld [vmem:[#allocation2 + $0x38] sm:$0xf]
        %v528 = vld [vmem:[#allocation2 + $0x3c] sm:$0xf]
        %v529 = vld [vmem:[%s6] sm:$0x1]
        %v531 = vlaneseq
        %v532 = vshrl.u32 %v531, 7
        %v533 = vsub.s32 0, %v532
        %v534 = vrot.slane %v529, %v533
        %v552 = vunpack.c.l.b16 %v513
        %v553 = vunpack.c.l.b16 %v514
        %v554 = vunpack.c.l.b16 %v515
        %v555 = vunpack.c.l.b16 %v516
        %v556 = vunpack.c.l.b16 %v517
        %v557 = vunpack.c.l.b16 %v518
        %v558 = vunpack.c.l.b16 %v519
        %v559 = vunpack.c.l.b16 %v520
        %v560 = vunpack.c.l.b16 %v521
        %v561 = vunpack.c.l.b16 %v522
        %v562 = vunpack.c.l.b16 %v523
        %v563 = vunpack.c.l.b16 %v524
        %v564 = vunpack.c.l.b16 %v525
        %v565 = vunpack.c.l.b16 %v526
        %v566 = vunpack.c.l.b16 %v527
        %v567 = vunpack.c.l.b16 %v528
        %v568 = vpack.c.b16 %v553, %v552
        %v569 = vpack.c.b16 %v555, %v554
        %v570 = vpack.c.b16 %v557, %v556
        %v571 = vpack.c.b16 %v559, %v558
        %v572 = vpack.c.b16 %v561, %v560
        %v573 = vpack.c.b16 %v563, %v562
        %v574 = vpack.c.b16 %v565, %v564
        %v575 = vpack.c.b16 %v567, %v566
        %584 = vmatprep.subr.bf16.mxu0 0
        %585 = vmatpush1.bf16.msra.mxu0 %v568
        %586 = vmatprep.subr.bf16.mxu0 0
        %587 = vmatpush1.bf16.msra.mxu0 %v569
        %588 = vmatprep.subr.bf16.mxu0 0
        %589 = vmatpush1.bf16.msra.mxu0 %v570
        %590 = vmatprep.subr.bf16.mxu0 0
        %591 = vmatpush1.bf16.msra.mxu0 %v571
        %592 = vmatprep.subr.bf16.mxu0 0
        %593 = vmatpush1.bf16.msra.mxu0 %v572
        %594 = vmatprep.subr.bf16.mxu0 0
        %595 = vmatpush1.bf16.msra.mxu0 %v573
        %596 = vmatprep.subr.bf16.mxu0 0
        %597 = vmatpush1.bf16.msra.mxu0 %v574
        %598 = vmatprep.subr.bf16.mxu0 0
        %599 = vmatpush1.bf16.msra.mxu0 %v575
        %600 = vmatprep.subr.bf16.mxu0 0
        %601 = vmatpush1.bf16.msra.mxu0 0
        %602 = vmatprep.subr.bf16.mxu0 0
        %603 = vmatpush1.bf16.msra.mxu0 0
        %604 = vmatprep.subr.bf16.mxu0 0
        %605 = vmatpush1.bf16.msra.mxu0 0
        %606 = vmatprep.subr.bf16.mxu0 0
        %607 = vmatpush1.bf16.msra.mxu0 0
        %608 = vmatprep.subr.bf16.mxu0 0
        %609 = vmatpush1.bf16.msra.mxu0 0
        %610 = vmatprep.subr.bf16.mxu0 0
        %611 = vmatpush1.bf16.msra.mxu0 0
        %612 = vmatprep.subr.bf16.mxu0 0
        %613 = vmatpush1.bf16.msra.mxu0 0
        %614 = vmatprep.subr.bf16.mxu0 0
        %615 = vmatpush1.bf16.msra.mxu0 0
        %616 = vmatprep.mubr.bf16.mxu0 0
        %617 = vmatmul.mubr.bf16.gmra.mrb[0].mxu0 %v511
        %v618 = vpop.f32.mrb[0].mxu0
        %v619 = vadd.f32 %v534, %v618
        %v620 = vpop.f32.mrb[0].mxu0
        %v621 = vpop.f32.mrb[0].mxu0
        %v622 = vadd.f32 %v534, %v621
        %v623 = vpop.f32.mrb[0].mxu0
        %624 = vmatprep.mubr.bf16.mxu0 0
        %625 = vmatmul.mubr.bf16.gmra.mrb[0].mxu0 %v512
        %v626 = vpop.f32.mrb[0].mxu0
        %v627 = vadd.f32 %v534, %v626
        %v628 = vpop.f32.mrb[0].mxu0
        %v629 = vpop.f32.mrb[0].mxu0
        %v630 = vadd.f32 %v534, %v629
        %v631 = vpop.f32.mrb[0].mxu0
        %632 = vdwg.mxu0
        %633 = vst [vmem:[%s287] sm:$0xff] %v619
        %634 = vst [vmem:[%s287 + $0x8] sm:$0xff] %v622
        %635 = vst [vmem:[%s287 + $0x10] sm:$0xff] %v627
        %636 = vst [vmem:[%s287 + $0x18] sm:$0xff] %v630
        %s637 = sand.u32 %s182, 1
        %s638 = scalar_lea.sflag [#allocation4], %s637
        %s639 = sand.u32 %s182, 1
        %s640 = smul.addr %s639, 32
        %s641 = scalar_lea.vmem [#allocation5], %s640
        // Predicated region
        $region53: #{tpu_custom_call.1} parent=47 // pred_check
          %p642 = pneg %p192
        $region54: #{tpu_custom_call.1} parent=47 // pred_check_branch
          %644 = sbr.rel (%p642) target = $region56
        $region55: #{tpu_custom_call.1} parent=47 // pred_region
          %s645 = smul.u32 4, %s22
          %s647 = ssub.s32 512, 512
          %648 = vsyncadd %s638, %s647
          %s649 = smul.addr %s645, 128
          %s650 = scalar_lea.hbm %s7, %s649
          %s651 = sshll.u32 %s641, 4
          %s652 = int_to_ptr.vmem [resolvable:$true] %s651
          %657 = dma.vmem_to_hbm [thread:$0]  %s652, 512, %s650, %s638, 128, 128, 8
        $region56: #{tpu_custom_call.1} parent=47 // pred_fallthru
          _
      $region48: #{tpu_custom_call.1} parent=5 // pred_fallthru
        _
      %p658 = scmp.le.s32.totalorder 2, %s17
      // Predicated region
      $region57: #{tpu_custom_call.1} parent=5 // pred_check
        %p659 = pneg %p658
      $region58: #{tpu_custom_call.1} parent=5 // pred_check_branch
        %661 = sbr.rel (%p659) target = $region60
      $region59: #{tpu_custom_call.1} parent=5 // pred_region
        %s662 = ssub.s32 %s17, 2
        // Predicated region
        $region61: #{tpu_custom_call.1} parent=59 // pred_check
          %p663 = pneg %p198
        $region62: #{tpu_custom_call.1} parent=59 // pred_check_branch
          %665 = sbr.rel (%p663) target = $region64
        $region63: #{tpu_custom_call.1} parent=59 // pred_region
          %s666 = sand.u32 %s183, 1
          %s667 = scalar_lea.sflag [#allocation4], %s666
          %s668 = sand.u32 %s183, 1
          %s669 = smul.addr %s668, 32
          %s670 = scalar_lea.vmem [#allocation5], %s669
          %671 = dma.done %s667, 512
        $region64: #{tpu_custom_call.1} parent=59 // pred_fallthru
          _
      $region60: #{tpu_custom_call.1} parent=5 // pred_fallthru
        _
    $region6: #{tpu_custom_call.1} parent=1 // loop_footer
      %s21 = sadd.s32 1, %s17
    $region7: #{tpu_custom_call.1} parent=1 // loop_footer_branch
      %16 = sbr.rel target = $region3
    $region8: #{tpu_custom_call.1} parent=1 // loop_exit
      _
    %672 = vsyncpa [#allocation3], 1
    %s673 = scalar_lea.sflag [#allocation3], 1
    %674 = vsyncpa %s673, 1
    %675 = vsyncpa [#allocation4], 1
    %s676 = scalar_lea.sflag [#allocation4], 1
    %677 = vsyncpa %s676, 1

</llo_original>
